<compile_context>
chip_gen: v7x
topology: tpu7x:2x2x1
jax: 0.10.0
libtpu: 0.0.40
codegen_flags: <defaults>
</compile_context>

<pallas_src>
import functools

import jax
import jax.numpy as jnp
from jax.experimental import pallas as pl
from jax.experimental.pallas import tpu as pltpu


def _round_up(x, m):
    return ((x + m - 1) // m) * m


def kmeans_kernel(x_ref, proj_ref, ct_ref, b2_ref, out_ref, *, compute_dtype):
    # Normalization (x - mean)/norm is folded into proj (scaled columns) and
    # into the shifted centers, so the kernel is: matmul -> cdist -> softmax.
    xv = x_ref[...].astype(compute_dtype)
    proj_x = jnp.dot(xv, proj_ref[...],
                     preferred_element_type=jnp.float32)        # (Bt, Pp) f32

    # ||a - c'||^2 = ||a||^2 + ||c'||^2 - 2 a.c'   (c' = center - bias)
    a2 = jnp.sum(proj_x * proj_x, axis=-1, keepdims=True)       # (Bt, 1)
    ab = jnp.dot(proj_x, ct_ref[...],
                 preferred_element_type=jnp.float32)            # (Bt, Kp)
    d2 = jnp.maximum(a2 + b2_ref[...] - 2.0 * ab, 0.0)
    logits = -jnp.sqrt(d2)                                      # (Bt, Kp)

    # Padded K lanes carry b2 = +1e30 -> logits ~ -3e15 -> exp underflows to 0,
    # so no in-kernel mask is needed.
    m = jnp.max(logits, axis=-1, keepdims=True)
    e = jnp.exp(logits - m)
    s = jnp.sum(e, axis=-1, keepdims=True)
    out_ref[...] = (e / s).astype(out_ref.dtype)                # exact softmax


@functools.partial(jax.jit,
                   static_argnames=("block_b", "use_bf16", "out_dtype"))
def kmeans_forward(x_nchw, mean, norm, projector, centers, *,
                   block_b=512, use_bf16=False, out_dtype=jnp.float32):
    """x_nchw: (B, C, H, W). Returns (B, K) softmax probabilities."""
    B = x_nchw.shape[0]
    # Keep x in its incoming dtype if already f32/bf16 (no extra HBM pass).
    if x_nchw.dtype not in (jnp.float32, jnp.bfloat16):
        x_nchw = x_nchw.astype(jnp.float32)
    x = x_nchw.reshape(B, -1)                                    # (B, D)
    D = x.shape[1]
    K, P = centers.shape

    # --- fold (x - mean) / norm into the projection & centers ---------------
    inv_norm = 1.0 / norm.astype(jnp.float32)                    # (D,)
    proj_f32 = projector.astype(jnp.float32)                     # (D, P)
    proj_fold = proj_f32 * inv_norm[:, None]                     # (D, P)
    bias = -(mean.astype(jnp.float32) * inv_norm)[None, :] @ proj_f32  # (1, P)
    c_shift = centers.astype(jnp.float32) - bias                 # (K, P)

    # --- lane-dense padding of P and K to 128 --------------------------------
    LANE = 128
    P_pad = _round_up(max(P, LANE), LANE)
    K_pad = _round_up(max(K, LANE), LANE)
    proj_fold = jnp.pad(proj_fold, ((0, 0), (0, P_pad - P)))     # (D, Pp)
    c_pad = jnp.pad(c_shift, ((0, K_pad - K), (0, P_pad - P)))   # (Kp, Pp)
    centers_t = c_pad.T                                          # (Pp, Kp)
    b2 = jnp.sum(c_pad * c_pad, axis=-1)                         # (Kp,)
    # Pre-mask padded K lanes: huge squared distance -> softmax prob exactly 0.
    b2 = jnp.where(jnp.arange(K_pad) < K, b2, 1e30)[None, :]     # (1, Kp)

    # bf16 path: cast only the tiny grid-invariant projector in the wrapper;
    # the x tile is cast inside the kernel (no extra HBM pass over x).
    op_dtype = jnp.bfloat16 if use_bf16 else jnp.float32
    proj_in = proj_fold.astype(op_dtype)

    # --- batch tiling --------------------------------------------------------
    sub = 16 if use_bf16 else 8           # full sublane packing for bf16
    b_ceil = _round_up(B, sub)
    blk = _round_up(max(min(block_b, b_ceil), sub), sub)
    # Prefer >= 2 grid steps when the batch allows (v7x has 2 TensorCores).
    if blk >= b_ceil and b_ceil >= 2 * sub:
        blk = _round_up(pl.cdiv(b_ceil, 2), sub)

    # Conservative VMEM budget (fits v7x's 64 MiB with headroom); shrink the
    # batch tile if the estimate overshoots.
    def _vmem_bytes(rows):
        xb = 2 * rows * D * x.dtype.itemsize                       # dbl-buffered x
        ob = 2 * rows * K_pad * jnp.dtype(out_dtype).itemsize      # dbl-buffered out
        wb = 2 * (D * P_pad * jnp.dtype(op_dtype).itemsize
                  + (P_pad * K_pad + K_pad) * 4)                   # invariants
        return xb + ob + wb

    budget = 40 * 1024 * 1024
    while blk > sub and _vmem_bytes(blk) > budget:
        blk = _round_up(blk // 2, sub)

    B_pad = _round_up(B, blk)
    if B_pad != B:
        x = jnp.pad(x, ((0, B_pad - B), (0, 0)))

    grid = (B_pad // blk,)
    out = pl.pallas_call(
        functools.partial(kmeans_kernel, compute_dtype=op_dtype),
        out_shape=jax.ShapeDtypeStruct((B_pad, K_pad), out_dtype),
        grid_spec=pltpu.PrefetchScalarGridSpec(
            num_scalar_prefetch=0,
            grid=grid,
            in_specs=[
                pl.BlockSpec((blk, D), lambda i: (i, 0)),          # x tile
                pl.BlockSpec((D, P_pad), lambda i: (0, 0)),        # folded proj
                pl.BlockSpec((P_pad, K_pad), lambda i: (0, 0)),    # shifted c^T
                pl.BlockSpec((1, K_pad), lambda i: (0, 0)),        # ||c'||^2
            ],
            out_specs=pl.BlockSpec((blk, K_pad), lambda i: (i, 0)),
        ),
        compiler_params=pltpu.CompilerParams(
            dimension_semantics=("parallel",),
            vmem_limit_bytes=48 * 1024 * 1024),
    )(x, proj_in, centers_t, b2)

    return out[:B, :K]


if __name__ == "__main__":
    # Small CIFAR-like shapes: B=16 images, C=3, H=W=8  ->  D = 192.
    # Projection dim P=60 and K=10 clusters exactly as in the module.
    B, C, H, W = 16, 3, 8, 8
    D = C * H * W
    P, K = 60, 10

    key = jax.random.PRNGKey(0)
    kx, km, kn, kp, kc = jax.random.split(key, 5)

    x = jax.random.uniform(kx, (B, C, H, W), dtype=jnp.float32)   # NCHW input

    # TODO(synk): the module's __init__/init() (CIFAR load, SVD, per-class
    # means) is training-time setup, not part of forward; parameters here are
    # deterministic synthetic stand-ins with the same shapes/roles.
    mean = jax.random.normal(km, ()) * 0.1 + 0.5                  # scalar mean
    norm = jnp.abs(jax.random.normal(kn, (D,))) + 1.0             # per-dim norm
    projector = jax.random.normal(kp, (D, P)) / jnp.sqrt(D)       # v[:, :60]
    centers = jax.random.normal(kc, (K, P))                       # class means

    out = kmeans_forward(x, mean, norm, projector, centers)
    out = jax.block_until_ready(out)

    # Pure-JAX reference of the original (unfolded) math.
    xf = x.reshape(B, -1)
    xn = (xf - mean) / norm
    px = xn @ projector
    ref_d = jnp.sqrt(
        jnp.maximum(
            jnp.sum(px * px, -1, keepdims=True)
            + jnp.sum(centers * centers, -1)[None, :]
            - 2.0 * px @ centers.T,
            0.0,
        )
    )
    ref = jax.nn.softmax(-ref_d, axis=1)
    assert out.shape == (B, K)
    assert jnp.allclose(out, ref, atol=2e-3, rtol=2e-3), (
        float(jnp.max(jnp.abs(out - ref))))
    assert jnp.allclose(jnp.sum(out, axis=1), 1.0, atol=1e-4)

    print("KERNEL_OK")
</pallas_src>

<mosaic_0001>
module attributes {stable_mosaic.version = 11 : i64} {
  func.func @kmeans_kernel(%arg0: i32, %arg1: memref<8x192xf32, #tpu.memory_space<vmem>>, %arg2: memref<192x128xf32, #tpu.memory_space<vmem>>, %arg3: memref<128x128xf32, #tpu.memory_space<vmem>>, %arg4: memref<1x128xf32, #tpu.memory_space<vmem>>, %arg5: memref<8x128xf32, #tpu.memory_space<vmem>>) attributes {dimension_semantics = [#tpu.dimension_semantics<parallel>], iteration_bounds = array<i64: 2>, scalar_prefetch = 0 : i64, scratch_operands = 0 : i64, tpu.core_type = #tpu.core_type<tc>, window_params = [{transform_indices = @transform_0, window_bounds = array<i64: 8, 192>}, {pipeline_mode = #tpu.pipeline_mode<synchronous>, transform_indices = @transform_1, window_bounds = array<i64: 192, 128>}, {pipeline_mode = #tpu.pipeline_mode<synchronous>, transform_indices = @transform_2, window_bounds = array<i64: 128, 128>}, {pipeline_mode = #tpu.pipeline_mode<synchronous>, transform_indices = @transform_3, window_bounds = array<i64: 1, 128>}, {transform_indices = @transform_4, window_bounds = array<i64: 8, 128>}]} {
    %c0 = arith.constant 0 : index
    %c0_0 = arith.constant 0 : index
    %0 = vector.load %arg1[%c0, %c0_0] : memref<8x192xf32, #tpu.memory_space<vmem>>, vector<8x192xf32>
    %c0_1 = arith.constant 0 : index
    %c0_2 = arith.constant 0 : index
    %1 = vector.load %arg2[%c0_1, %c0_2] : memref<192x128xf32, #tpu.memory_space<vmem>>, vector<192x128xf32>
    %cst = arith.constant dense<0.000000e+00> : vector<8x128xf32>
    %2 = tpu.matmul %0, %1, %cst {dimension_numbers = #tpu.dot_dimension_numbers<[1], [0], [0], [1], [0, 0, 1, 1], [], []>} : vector<8x192xf32>, vector<192x128xf32>, vector<8x128xf32> -> vector<8x128xf32>
    %3 = arith.mulf %2, %2 : vector<8x128xf32>
    %cst_3 = arith.constant dense<0.000000e+00> : vector<8xf32>
    %4 = vector.multi_reduction <add>, %3, %cst_3 [1] : vector<8x128xf32> to vector<8xf32>
    %5 = vector.shape_cast %4 : vector<8xf32> to vector<8x1xf32>
    %c0_4 = arith.constant 0 : index
    %c0_5 = arith.constant 0 : index
    %6 = vector.load %arg3[%c0_4, %c0_5] : memref<128x128xf32, #tpu.memory_space<vmem>>, vector<128x128xf32>
    %cst_6 = arith.constant dense<0.000000e+00> : vector<8x128xf32>
    %7 = tpu.matmul %2, %6, %cst_6 {dimension_numbers = #tpu.dot_dimension_numbers<[1], [0], [0], [1], [0, 0, 1, 1], [], []>} : vector<8x128xf32>, vector<128x128xf32>, vector<8x128xf32> -> vector<8x128xf32>
    %c0_7 = arith.constant 0 : index
    %c0_8 = arith.constant 0 : index
    %8 = vector.load %arg4[%c0_7, %c0_8] : memref<1x128xf32, #tpu.memory_space<vmem>>, vector<1x128xf32>
    %9 = vector.broadcast %5 : vector<8x1xf32> to vector<8x128xf32>
    %10 = vector.broadcast %8 : vector<1x128xf32> to vector<8x128xf32>
    %11 = arith.addf %9, %10 : vector<8x128xf32>
    %cst_9 = arith.constant 2.000000e+00 : f32
    %12 = vector.broadcast %cst_9 : f32 to vector<8x128xf32>
    %13 = arith.mulf %12, %7 : vector<8x128xf32>
    %14 = arith.subf %11, %13 : vector<8x128xf32>
    %cst_10 = arith.constant 0.000000e+00 : f32
    %15 = vector.broadcast %cst_10 : f32 to vector<8x128xf32>
    %16 = arith.maximumf %14, %15 : vector<8x128xf32>
    %17 = math.sqrt %16 : vector<8x128xf32>
    %cst_11 = arith.constant 0.000000e+00 : f32
    %18 = vector.broadcast %cst_11 : f32 to vector<8x128xf32>
    %19 = arith.subf %18, %17 : vector<8x128xf32>
    %cst_12 = arith.constant dense<0xFF800000> : vector<8xf32>
    %20 = vector.multi_reduction <maximumf>, %19, %cst_12 [1] : vector<8x128xf32> to vector<8xf32>
    %21 = vector.shape_cast %20 : vector<8xf32> to vector<8x1xf32>
    %22 = vector.broadcast %21 : vector<8x1xf32> to vector<8x128xf32>
    %23 = arith.subf %19, %22 : vector<8x128xf32>
    %24 = math.exp %23 : vector<8x128xf32>
    %cst_13 = arith.constant dense<0.000000e+00> : vector<8xf32>
    %25 = vector.multi_reduction <add>, %24, %cst_13 [1] : vector<8x128xf32> to vector<8xf32>
    %26 = vector.shape_cast %25 : vector<8xf32> to vector<8x1xf32>
    %27 = vector.broadcast %26 : vector<8x1xf32> to vector<8x128xf32>
    %28 = arith.divf %24, %27 : vector<8x128xf32>
    %c0_14 = arith.constant 0 : index
    %c0_15 = arith.constant 0 : index
    %29 = vector.load %arg5[%c0_14, %c0_15] : memref<8x128xf32, #tpu.memory_space<vmem>>, vector<8x128xf32>
    tpu.vector_store %arg5[%c0_14, %c0_15], %28 {strides = array<i32>} : memref<8x128xf32, #tpu.memory_space<vmem>>, vector<8x128xf32>,
    return
  }
  func.func @transform_0(%arg0: i32) -> (i32, i32) {
    %c0_i32 = arith.constant 0 : i32
    %c0_i32_0 = arith.constant 0 : i32
    return %arg0, %c0_i32 : i32, i32
  }
  func.func @transform_1(%arg0: i32) -> (i32, i32) {
    %c0_i32 = arith.constant 0 : i32
    %c0_i32_0 = arith.constant 0 : i32
    %c0_i32_1 = arith.constant 0 : i32
    return %c0_i32, %c0_i32_0 : i32, i32
  }
  func.func @transform_2(%arg0: i32) -> (i32, i32) {
    %c0_i32 = arith.constant 0 : i32
    %c0_i32_0 = arith.constant 0 : i32
    %c0_i32_1 = arith.constant 0 : i32
    return %c0_i32, %c0_i32_0 : i32, i32
  }
  func.func @transform_3(%arg0: i32) -> (i32, i32) {
    %c0_i32 = arith.constant 0 : i32
    %c0_i32_0 = arith.constant 0 : i32
    %c0_i32_1 = arith.constant 0 : i32
    return %c0_i32, %c0_i32_0 : i32, i32
  }
  func.func @transform_4(%arg0: i32) -> (i32, i32) {
    %c0_i32 = arith.constant 0 : i32
    %c0_i32_0 = arith.constant 0 : i32
    return %arg0, %c0_i32 : i32, i32
  }
}

</mosaic_0001>

<llo_original>
// kernel: kmeans_forward.1
$region0: #{kmeans_forward.1}
  #allocation0 [shape = 'u32[]', space=smem, size = 0x4, offset = 0x4, fixed_abs, tag = 'smem constant byte address 0x4 - core index']
  #allocation1 [shape = 'u32[144,128]{1,0:T(1,128)}', space=vmem, size = 0x12000, scoped, tag = 'internal scratch']
  %s0 = inlined_call_operand.vmem [shape: f32[16,192], index: 0, kind: input, shape index: {}]
  %s1 = inlined_call_operand.vmem [shape: f32[192,128], index: 1, kind: input, shape index: {}]
  %s2 = inlined_call_operand.vmem [shape: f32[128,128], index: 2, kind: input, shape index: {}]
  %s3 = inlined_call_operand.vmem [shape: f32[1,128], index: 3, kind: input, shape index: {}]
  %s4 = inlined_call_operand.hbm [shape: f32[16,128], index: 4, kind: output, shape index: {}]
  %s5 = sld [smem:[#allocation0]]
  $region49: #{kmeans_forward.1} parent=0
    _
  %s7 = ssub.s32 1, %s5
  %s8 = scalar_select 0, %s7, %s5
  $region1: #{kmeans_forward.1} parent=0
    #allocation2 [shape = 'u8[8192]{0}', space=vmem, size = 0x2000, scoped, tag = 'output window, operand 0']
    #allocation3 [shape = 's32[2]{0}', space=sflag, size = 0x8, scoped, tag = 'scoped memory for kmeans_forward.1']
    %9 = vsyncpa [#allocation3], 0
    %s10 = scalar_lea.sflag [#allocation3], 1
    %11 = vsyncpa %s10, 0
    loop: start=0, step=1, limit=4
    $region2: #{kmeans_forward.1} parent=1 // loop_pre_header
      _
    $region3: #{kmeans_forward.1} parent=1 // loop_header
      %s13 = sphi 0, %s17
      %p14 = scmp.ge.s32.totalorder %s13, 4
      %s23 = sphi 0, %s25
      %s26 = sphi 0, %s23
      %s27 = sphi 0, %s26
      %s43 = sphi 0, %s27
      %s47 = sphi 0, %s47
      %s49 = sphi 0, %s47
      %s50 = sphi 0, %s49
      %s64 = sphi 0, %s50
      %s68 = sphi 0, %s68
      %s70 = sphi 0, %s68
      %s71 = sphi 0, %s70
      %s85 = sphi 0, %s71
      %s89 = sphi 0, %s89
      %s91 = sphi 0, %s89
      %s92 = sphi 0, %s91
      %s106 = sphi 0, %s92
      %s112 = sphi 0, %s114
      %s115 = sphi 0, %s112
      %s116 = sphi 0, %s115
      %s132 = sphi 0, %s116
    $region4: #{kmeans_forward.1} parent=1 // loop_header_branch
      %16 = sbr.rel (%p14) target = $region8
    $region5: #{kmeans_forward.1} parent=1 // loop_body
      %s18 = ssub.s32 %s13, 1
      %s19 = ssub.s32 %s13, 2
      %s20 = sadd.s32 %s13, 1
      %s21 = ssub.s32 %s13, %s20
      %p22 = scmp.eq.s32.totalorder %s21, 0
      %s24 = sadd.s32 %s23, 1
      %s25 = scalar_select %p22, %s23, %s24
      %p28 = pneg %p22
      %p29 = scmp.eq.s32.totalorder %s13, 1
      %p30 = por %p28, %p29
      %p31 = scmp.ne.s32.totalorder %s23, %s26
      %p32 = scmp.eq.s32.totalorder %s13, 0
      %p33 = por %p31, %p32
      %p34 = scmp.ne.s32.totalorder %s23, %s26
      %p35 = scmp.eq.s32.totalorder %s18, 1
      %p36 = por %p34, %p35
      %p37 = scmp.ne.s32.totalorder %s26, %s27
      %p38 = scmp.eq.s32.totalorder %s18, 0
      %p39 = por %p37, %p38
      %p40 = scmp.ne.s32.totalorder %s26, %s27
      %p41 = scmp.eq.s32.totalorder %s19, 1
      %p42 = por %p40, %p41
      %p44 = scmp.ne.s32.totalorder %s27, %s43
      %p45 = scmp.eq.s32.totalorder %s19, 0
      %p46 = por %p44, %p45
      %s48 = sadd.s32 %s47, 1
      %p51 = scmp.eq.s32.totalorder %s13, 1
      %p52 = scmp.ne.s32.totalorder %s47, %s49
      %p53 = scmp.eq.s32.totalorder %s13, 0
      %p54 = por %p52, %p53
      %p55 = scmp.ne.s32.totalorder %s47, %s49
      %p56 = scmp.eq.s32.totalorder %s18, 1
      %p57 = por %p55, %p56
      %p58 = scmp.ne.s32.totalorder %s49, %s50
      %p59 = scmp.eq.s32.totalorder %s18, 0
      %p60 = por %p58, %p59
      %p61 = scmp.ne.s32.totalorder %s49, %s50
      %p62 = scmp.eq.s32.totalorder %s19, 1
      %p63 = por %p61, %p62
      %p65 = scmp.ne.s32.totalorder %s50, %s64
      %p66 = scmp.eq.s32.totalorder %s19, 0
      %p67 = por %p65, %p66
      %s69 = sadd.s32 %s68, 1
      %p72 = scmp.eq.s32.totalorder %s13, 1
      %p73 = scmp.ne.s32.totalorder %s68, %s70
      %p74 = scmp.eq.s32.totalorder %s13, 0
      %p75 = por %p73, %p74
      %p76 = scmp.ne.s32.totalorder %s68, %s70
      %p77 = scmp.eq.s32.totalorder %s18, 1
      %p78 = por %p76, %p77
      %p79 = scmp.ne.s32.totalorder %s70, %s71
      %p80 = scmp.eq.s32.totalorder %s18, 0
      %p81 = por %p79, %p80
      %p82 = scmp.ne.s32.totalorder %s70, %s71
      %p83 = scmp.eq.s32.totalorder %s19, 1
      %p84 = por %p82, %p83
      %p86 = scmp.ne.s32.totalorder %s71, %s85
      %p87 = scmp.eq.s32.totalorder %s19, 0
      %p88 = por %p86, %p87
      %s90 = sadd.s32 %s89, 1
      %p93 = scmp.eq.s32.totalorder %s13, 1
      %p94 = scmp.ne.s32.totalorder %s89, %s91
      %p95 = scmp.eq.s32.totalorder %s13, 0
      %p96 = por %p94, %p95
      %p97 = scmp.ne.s32.totalorder %s89, %s91
      %p98 = scmp.eq.s32.totalorder %s18, 1
      %p99 = por %p97, %p98
      %p100 = scmp.ne.s32.totalorder %s91, %s92
      %p101 = scmp.eq.s32.totalorder %s18, 0
      %p102 = por %p100, %p101
      %p103 = scmp.ne.s32.totalorder %s91, %s92
      %p104 = scmp.eq.s32.totalorder %s19, 1
      %p105 = por %p103, %p104
      %p107 = scmp.ne.s32.totalorder %s92, %s106
      %p108 = scmp.eq.s32.totalorder %s19, 0
      %p109 = por %p107, %p108
      %s110 = ssub.s32 %s13, %s20
      %p111 = scmp.eq.s32.totalorder %s110, 0
      %s113 = sadd.s32 %s112, 1
      %s114 = scalar_select %p111, %s112, %s113
      %p117 = pneg %p111
      %p118 = scmp.eq.s32.totalorder %s13, 1
      %p119 = por %p117, %p118
      %p120 = scmp.ne.s32.totalorder %s112, %s115
      %p121 = scmp.eq.s32.totalorder %s13, 0
      %p122 = por %p120, %p121
      %p123 = scmp.ne.s32.totalorder %s112, %s115
      %p124 = scmp.eq.s32.totalorder %s18, 1
      %p125 = por %p123, %p124
      %p126 = scmp.ne.s32.totalorder %s115, %s116
      %p127 = scmp.eq.s32.totalorder %s18, 0
      %p128 = por %p126, %p127
      %p129 = scmp.ne.s32.totalorder %s115, %s116
      %p130 = scmp.eq.s32.totalorder %s19, 1
      %p131 = por %p129, %p130
      %p133 = scmp.ne.s32.totalorder %s116, %s132
      %p134 = scmp.eq.s32.totalorder %s19, 0
      %p135 = por %p133, %p134
      %p136 = scmp.le.s32.totalorder 1, %s13
      %p137 = scmp.lt.s32.totalorder %s13, 3
      %p138 = pnand %p136, %p137
      %p139 = pneg %p138
      // Predicated region
      $region9: #{kmeans_forward.1} parent=5 // pred_check
        _
      $region10: #{kmeans_forward.1} parent=5 // pred_check_branch
        %141 = sbr.rel (%p138) target = $region12
      $region11: #{kmeans_forward.1} parent=5 // pred_region
        %s142 = ssub.s32 %s13, 1
        // Predicated region
        $region13: #{kmeans_forward.1} parent=11 // pred_check
          %p143 = pneg %p60
        $region14: #{kmeans_forward.1} parent=11 // pred_check_branch
          %145 = sbr.rel (%p143) target = $region16
        $region15: #{kmeans_forward.1} parent=11 // pred_region
          _
        $region16: #{kmeans_forward.1} parent=11 // pred_fallthru
          _
        // Predicated region
        $region17: #{kmeans_forward.1} parent=11 // pred_check
          %p146 = pneg %p81
        $region18: #{kmeans_forward.1} parent=11 // pred_check_branch
          %148 = sbr.rel (%p146) target = $region20
        $region19: #{kmeans_forward.1} parent=11 // pred_region
          _
        $region20: #{kmeans_forward.1} parent=11 // pred_fallthru
          _
        // Predicated region
        $region21: #{kmeans_forward.1} parent=11 // pred_check
          %p149 = pneg %p102
        $region22: #{kmeans_forward.1} parent=11 // pred_check_branch
          %151 = sbr.rel (%p149) target = $region24
        $region23: #{kmeans_forward.1} parent=11 // pred_region
          _
        $region24: #{kmeans_forward.1} parent=11 // pred_fallthru
          _
      $region12: #{kmeans_forward.1} parent=5 // pred_fallthru
        _
      %p152 = scmp.lt.s32.totalorder %s13, 2
      // Predicated region
      $region25: #{kmeans_forward.1} parent=5 // pred_check
        %p153 = pneg %p152
      $region26: #{kmeans_forward.1} parent=5 // pred_check_branch
        %155 = sbr.rel (%p153) target = $region28
      $region27: #{kmeans_forward.1} parent=5 // pred_region
        // Predicated region
        $region29: #{kmeans_forward.1} parent=27 // pred_check
          %p156 = pneg %p33
        $region30: #{kmeans_forward.1} parent=27 // pred_check_branch
          %158 = sbr.rel (%p156) target = $region32
        $region31: #{kmeans_forward.1} parent=27 // pred_region
          %p159 = scmp.lt.s32.totalorder %s13, 1
          %s160 = scalar_select %p159, %s13, 1
          %s161 = smul.addr %s160, 2
          %s162 = smul.addr %s161, 8
          %s163 = scalar_lea.vmem %s0, %s162
        $region32: #{kmeans_forward.1} parent=27 // pred_fallthru
          _
      $region28: #{kmeans_forward.1} parent=5 // pred_fallthru
        _
      %p164 = scmp.le.s32.totalorder 1, %s13
      %p165 = scmp.lt.s32.totalorder %s13, 3
      %p166 = pnand %p164, %p165
      %p167 = pneg %p166
      // Predicated region
      $region33: #{kmeans_forward.1} parent=5 // pred_check
        _
      $region34: #{kmeans_forward.1} parent=5 // pred_check_branch
        %169 = sbr.rel (%p166) target = $region36
      $region35: #{kmeans_forward.1} parent=5 // pred_region
        %s170 = ssub.s32 %s13, 1
        %p171 = scmp.lt.s32.totalorder %s18, 1
        %s172 = scalar_select %p171, %s18, 1
        %s173 = smul.addr %s172, 2
        %s174 = smul.addr %s173, 8
        %s175 = scalar_lea.vmem %s0, %s174
        %p176 = pneg %p39
        %p177 = pneg %p36
        %p178 = pneg %p60
        %p179 = pneg %p57
        %p180 = pneg %p81
        %p181 = pneg %p78
        %p182 = pneg %p102
        %p183 = pneg %p99
        %p184 = pneg %p128
        %p185 = pneg %p125
        %s186 = sand.u32 %s115, 1
        %s187 = scalar_lea.sflag [#allocation3], %s186
        %s188 = sand.u32 %s115, 1
        %s189 = smul.addr %s188, 8
        %s190 = scalar_lea.vmem [#allocation2], %s189
        %p191 = scmp.lt.s32.totalorder %s18, 1
        %s192 = scalar_select %p191, %s18, 1
        %s193 = smul.addr %s192, 2
        %s194 = smul.addr %s193, 8
        %s195 = scalar_lea.vmem %s0, %s194
        %v196 = vld [vmem:[%s195] sm:$0xff]
        %v197 = vld [vmem:[%s195 + $0x8] sm:$0xff]
        %v198 = vld [vmem:[%s1] sm:$0xff]
        %v199 = vld [vmem:[%s1 + $0x8] sm:$0xff]
        %v200 = vld [vmem:[%s1 + $0x10] sm:$0xff]
        %v201 = vld [vmem:[%s1 + $0x18] sm:$0xff]
        %v202 = vld [vmem:[%s1 + $0x20] sm:$0xff]
        %v203 = vld [vmem:[%s1 + $0x28] sm:$0xff]
        %v204 = vld [vmem:[%s1 + $0x30] sm:$0xff]
        %v205 = vld [vmem:[%s1 + $0x38] sm:$0xff]
        %v206 = vld [vmem:[%s1 + $0x40] sm:$0xff]
        %v207 = vld [vmem:[%s1 + $0x48] sm:$0xff]
        %v208 = vld [vmem:[%s1 + $0x50] sm:$0xff]
        %v209 = vld [vmem:[%s1 + $0x58] sm:$0xff]
        %v210 = vld [vmem:[%s1 + $0x60] sm:$0xff]
        %v211 = vld [vmem:[%s1 + $0x68] sm:$0xff]
        %v212 = vld [vmem:[%s1 + $0x70] sm:$0xff]
        %v213 = vld [vmem:[%s1 + $0x78] sm:$0xff]
        %v214 = vld [vmem:[%s1 + $0x80] sm:$0xff]
        %v215 = vld [vmem:[%s1 + $0x88] sm:$0xff]
        %v216 = vld [vmem:[%s1 + $0x90] sm:$0xff]
        %v217 = vld [vmem:[%s1 + $0x98] sm:$0xff]
        %v218 = vld [vmem:[%s1 + $0xa0] sm:$0xff]
        %v219 = vld [vmem:[%s1 + $0xa8] sm:$0xff]
        %v220 = vld [vmem:[%s1 + $0xb0] sm:$0xff]
        %v221 = vld [vmem:[%s1 + $0xb8] sm:$0xff]
        %vm222 = vcmask 523264
        %v224 = vsel %vm222, %v197, 0
        %226 = vmatprep.subr.mxu0 0.0
        %227 = vmatpush1.msra.mxu0 %v198
        %228 = vmatprep.subr.mxu0 0.0
        %229 = vmatpush1.msra.mxu0 %v199
        %230 = vmatprep.subr.mxu0 0.0
        %231 = vmatpush1.msra.mxu0 %v200
        %232 = vmatprep.subr.mxu0 0.0
        %233 = vmatpush1.msra.mxu0 %v201
        %234 = vmatprep.subr.mxu0 0.0
        %235 = vmatpush1.msra.mxu0 %v202
        %236 = vmatprep.subr.mxu0 0.0
        %237 = vmatpush1.msra.mxu0 %v203
        %238 = vmatprep.subr.mxu0 0.0
        %239 = vmatpush1.msra.mxu0 %v204
        %240 = vmatprep.subr.mxu0 0.0
        %241 = vmatpush1.msra.mxu0 %v205
        %242 = vmatprep.subr.mxu0 0.0
        %243 = vmatpush1.msra.mxu0 %v206
        %244 = vmatprep.subr.mxu0 0.0
        %245 = vmatpush1.msra.mxu0 %v207
        %246 = vmatprep.subr.mxu0 0.0
        %247 = vmatpush1.msra.mxu0 %v208
        %248 = vmatprep.subr.mxu0 0.0
        %249 = vmatpush1.msra.mxu0 %v209
        %250 = vmatprep.subr.mxu0 0.0
        %251 = vmatpush1.msra.mxu0 %v210
        %252 = vmatprep.subr.mxu0 0.0
        %253 = vmatpush1.msra.mxu0 %v211
        %254 = vmatprep.subr.mxu0 0.0
        %255 = vmatpush1.msra.mxu0 %v212
        %256 = vmatprep.subr.mxu0 0.0
        %257 = vmatpush1.msra.mxu0 %v213
        %258 = vmatprep.subr.mxu0 0.0
        %259 = vmatpush1.msra.mxu0 %v214
        %260 = vmatprep.subr.mxu0 0.0
        %261 = vmatpush1.msra.mxu0 %v215
        %262 = vmatprep.subr.mxu0 0.0
        %263 = vmatpush1.msra.mxu0 %v216
        %264 = vmatprep.subr.mxu0 0.0
        %265 = vmatpush1.msra.mxu0 %v217
        %266 = vmatprep.subr.mxu0 0.0
        %267 = vmatpush1.msra.mxu0 %v218
        %268 = vmatprep.subr.mxu0 0.0
        %269 = vmatpush1.msra.mxu0 %v219
        %270 = vmatprep.subr.mxu0 0.0
        %271 = vmatpush1.msra.mxu0 %v220
        %272 = vmatprep.subr.mxu0 0.0
        %273 = vmatpush1.msra.mxu0 %v221
        %274 = vmatprep.subr.mxu0 0.0
        %275 = vmatpush1.msra.mxu0 0.0
        %276 = vmatprep.subr.mxu0 0.0
        %277 = vmatpush1.msra.mxu0 0.0
        %278 = vmatprep.subr.mxu0 0.0
        %279 = vmatpush1.msra.mxu0 0.0
        %280 = vmatprep.subr.mxu0 0.0
        %281 = vmatpush1.msra.mxu0 0.0
        %282 = vmatprep.subr.mxu0 0.0
        %283 = vmatpush1.msra.mxu0 0.0
        %284 = vmatprep.subr.mxu0 0.0
        %285 = vmatpush1.msra.mxu0 0.0
        %286 = vmatprep.subr.mxu0 0.0
        %287 = vmatpush1.msra.mxu0 0.0
        %288 = vmatprep.subr.mxu0 0.0
        %289 = vmatpush1.msra.mxu0 0.0
        %290 = vmatprep.mubr.f32.mxu0 %v224
        %291 = vmatmul.mubr.f32.gmra.mrb[0].mxu0 %v196
        %v292 = vpop.f32.mrb[0].mxu0
        %v293 = vadd.f32 0.0, %v292
        %v294 = vpop.f32.mrb[0].mxu0
        %295 = vdwg.mxu0
        %v296 = vmul.f32 %v293, %v293
        %297 = vadd.xlane.f32.xlu0 %v296
        %v298 = vpop.xlane.xlu0 %297
        %v299 = vld [vmem:[%s2] sm:$0xff]
        %v300 = vld [vmem:[%s2 + $0x8] sm:$0xff]
        %v301 = vld [vmem:[%s2 + $0x10] sm:$0xff]
        %v302 = vld [vmem:[%s2 + $0x18] sm:$0xff]
        %v303 = vld [vmem:[%s2 + $0x20] sm:$0xff]
        %v304 = vld [vmem:[%s2 + $0x28] sm:$0xff]
        %v305 = vld [vmem:[%s2 + $0x30] sm:$0xff]
        %v306 = vld [vmem:[%s2 + $0x38] sm:$0xff]
        %v307 = vld [vmem:[%s2 + $0x40] sm:$0xff]
        %v308 = vld [vmem:[%s2 + $0x48] sm:$0xff]
        %v309 = vld [vmem:[%s2 + $0x50] sm:$0xff]
        %v310 = vld [vmem:[%s2 + $0x58] sm:$0xff]
        %v311 = vld [vmem:[%s2 + $0x60] sm:$0xff]
        %v312 = vld [vmem:[%s2 + $0x68] sm:$0xff]
        %v313 = vld [vmem:[%s2 + $0x70] sm:$0xff]
        %v314 = vld [vmem:[%s2 + $0x78] sm:$0xff]
        %315 = vmatprep.subr.mxu0 0.0
        %316 = vmatpush1.msra.mxu0 %v299
        %317 = vmatprep.subr.mxu0 0.0
        %318 = vmatpush1.msra.mxu0 %v300
        %319 = vmatprep.subr.mxu0 0.0
        %320 = vmatpush1.msra.mxu0 %v301
        %321 = vmatprep.subr.mxu0 0.0
        %322 = vmatpush1.msra.mxu0 %v302
        %323 = vmatprep.subr.mxu0 0.0
        %324 = vmatpush1.msra.mxu0 %v303
        %325 = vmatprep.subr.mxu0 0.0
        %326 = vmatpush1.msra.mxu0 %v304
        %327 = vmatprep.subr.mxu0 0.0
        %328 = vmatpush1.msra.mxu0 %v305
        %329 = vmatprep.subr.mxu0 0.0
        %330 = vmatpush1.msra.mxu0 %v306
        %331 = vmatprep.subr.mxu0 0.0
        %332 = vmatpush1.msra.mxu0 %v307
        %333 = vmatprep.subr.mxu0 0.0
        %334 = vmatpush1.msra.mxu0 %v308
        %335 = vmatprep.subr.mxu0 0.0
        %336 = vmatpush1.msra.mxu0 %v309
        %337 = vmatprep.subr.mxu0 0.0
        %338 = vmatpush1.msra.mxu0 %v310
        %339 = vmatprep.subr.mxu0 0.0
        %340 = vmatpush1.msra.mxu0 %v311
        %341 = vmatprep.subr.mxu0 0.0
        %342 = vmatpush1.msra.mxu0 %v312
        %343 = vmatprep.subr.mxu0 0.0
        %344 = vmatpush1.msra.mxu0 %v313
        %345 = vmatprep.subr.mxu0 0.0
        %346 = vmatpush1.msra.mxu0 %v314
        %347 = vmatprep.subr.mxu0 0.0
        %348 = vmatpush1.msra.mxu0 0.0
        %349 = vmatprep.subr.mxu0 0.0
        %350 = vmatpush1.msra.mxu0 0.0
        %351 = vmatprep.subr.mxu0 0.0
        %352 = vmatpush1.msra.mxu0 0.0
        %353 = vmatprep.subr.mxu0 0.0
        %354 = vmatpush1.msra.mxu0 0.0
        %355 = vmatprep.subr.mxu0 0.0
        %356 = vmatpush1.msra.mxu0 0.0
        %357 = vmatprep.subr.mxu0 0.0
        %358 = vmatpush1.msra.mxu0 0.0
        %359 = vmatprep.subr.mxu0 0.0
        %360 = vmatpush1.msra.mxu0 0.0
        %361 = vmatprep.subr.mxu0 0.0
        %362 = vmatpush1.msra.mxu0 0.0
        %363 = vmatprep.subr.mxu0 0.0
        %364 = vmatpush1.msra.mxu0 0.0
        %365 = vmatprep.subr.mxu0 0.0
        %366 = vmatpush1.msra.mxu0 0.0
        %367 = vmatprep.subr.mxu0 0.0
        %368 = vmatpush1.msra.mxu0 0.0
        %369 = vmatprep.subr.mxu0 0.0
        %370 = vmatpush1.msra.mxu0 0.0
        %371 = vmatprep.subr.mxu0 0.0
        %372 = vmatpush1.msra.mxu0 0.0
        %373 = vmatprep.subr.mxu0 0.0
        %374 = vmatpush1.msra.mxu0 0.0
        %375 = vmatprep.subr.mxu0 0.0
        %376 = vmatpush1.msra.mxu0 0.0
        %377 = vmatprep.subr.mxu0 0.0
        %378 = vmatpush1.msra.mxu0 0.0
        %379 = vmatprep.mubr.f32.mxu0 0.0
        %380 = vmatmul.mubr.f32.gmra.mrb[0].mxu0 %v293
        %v381 = vpop.f32.mrb[0].mxu0
        %v382 = vadd.f32 0.0, %v381
        %v383 = vpop.f32.mrb[0].mxu0
        %384 = vdwg.mxu0
        %v385 = vld [vmem:[%s3] sm:$0x1]
        %v387 = vlaneseq
        %v388 = vshrl.u32 %v387, 7
        %v389 = vsub.s32 0, %v388
        %v390 = vrot.slane %v385, %v389
        %v392 = vadd.f32 %v298, %v390
        %v393 = vmul.f32 %v382, 2.0
        %v394 = vsub.f32 %v392, %v393
        %v395 = vmax.f32 %v394, 0.0
        %v396 = vrsqrt.pop %v395
        %v397 = vmul.f32 %v395, %v396
        %vm398 = vcmp.eq.f32.partialorder %v395, inf
        %v399 = vsel %vm398, %v395, %v397
        %vm400 = vcmp.eq.f32.partialorder %v395, 0.0
        %v401 = vand.u32 %v395, 2147483648
        %v402 = vsel %vm400, %v401, %v399
        %v403 = vsub.f32 0.0, %v402
        %404 = vmax.xlane.f32.xlu0 %v403
        %v405 = vpop.xlane.xlu0 %404
        %v406 = vsub.f32 %v403, %v405
        %v407 = vmul.f32 %v406, 1.442695
        %v408 = vpow.pop %v407
        %409 = vadd.xlane.f32.xlu0 %v408
        %v410 = vpop.xlane.xlu0 %409
        %v411 = vrcp.pop %v410
        %v412 = vmul.f32 %v408, %v411
        %413 = vst [vmem:[%s190] sm:$0xff] %v412
        %s414 = sand.u32 %s115, 1
        %s415 = scalar_lea.sflag [#allocation3], %s414
        %s416 = sand.u32 %s115, 1
        %s417 = smul.addr %s416, 8
        %s418 = scalar_lea.vmem [#allocation2], %s417
        // Predicated region
        $region37: #{kmeans_forward.1} parent=35 // pred_check
          %p419 = pneg %p125
        $region38: #{kmeans_forward.1} parent=35 // pred_check_branch
          %421 = sbr.rel (%p419) target = $region40
        $region39: #{kmeans_forward.1} parent=35 // pred_region
          %s423 = ssub.s32 128, 128
          %424 = vsyncadd %s415, %s423
          %s425 = smul.addr %s18, 128
          %s426 = scalar_lea.hbm %s4, %s425
          %s428 = sshll.u32 %s418, 4
          %s429 = int_to_ptr.vmem [resolvable:$true] %s428
          %431 = dma.vmem_to_hbm [thread:$0]  %s429, 128, %s426, %s415
        $region40: #{kmeans_forward.1} parent=35 // pred_fallthru
          _
      $region36: #{kmeans_forward.1} parent=5 // pred_fallthru
        _
      %p432 = scmp.le.s32.totalorder 2, %s13
      // Predicated region
      $region41: #{kmeans_forward.1} parent=5 // pred_check
        %p433 = pneg %p432
      $region42: #{kmeans_forward.1} parent=5 // pred_check_branch
        %435 = sbr.rel (%p433) target = $region44
      $region43: #{kmeans_forward.1} parent=5 // pred_region
        %s436 = ssub.s32 %s13, 2
        // Predicated region
        $region45: #{kmeans_forward.1} parent=43 // pred_check
          %p437 = pneg %p131
        $region46: #{kmeans_forward.1} parent=43 // pred_check_branch
          %439 = sbr.rel (%p437) target = $region48
        $region47: #{kmeans_forward.1} parent=43 // pred_region
          %s440 = sand.u32 %s116, 1
          %s441 = scalar_lea.sflag [#allocation3], %s440
          %s442 = sand.u32 %s116, 1
          %s443 = smul.addr %s442, 8
          %s444 = scalar_lea.vmem [#allocation2], %s443
          %445 = dma.done %s441, 128
        $region48: #{kmeans_forward.1} parent=43 // pred_fallthru
          _
      $region44: #{kmeans_forward.1} parent=5 // pred_fallthru
        _
    $region6: #{kmeans_forward.1} parent=1 // loop_footer
      %s17 = sadd.s32 1, %s13
    $region7: #{kmeans_forward.1} parent=1 // loop_footer_branch
      %12 = sbr.rel target = $region3
    $region8: #{kmeans_forward.1} parent=1 // loop_exit
      _
    %446 = vsyncpa [#allocation3], 1
    %s447 = scalar_lea.sflag [#allocation3], 1
    %448 = vsyncpa %s447, 1

</llo_original>
